<compile_context>
chip_gen: v7x
topology: tpu7x:2x2x1
jax: 0.10.0
libtpu: 0.0.40
codegen_flags: <defaults>
</compile_context>

<pallas_src>
import jax
import jax.numpy as jnp
from jax.experimental import pallas as pl
from jax.experimental.pallas import tpu as pltpu


# ----------------------------------------------------------------------------
# Pallas kernel: one (pixel-tile, batch) step; full J contraction in one dot.
# ----------------------------------------------------------------------------
def _shade_kernel(n_ref, l_ref, c_ref, t_ref, srgb_ref, nrm_ref):
    b = pl.program_id(1)

    # F.normalize(pixel_normals, p=2, dim=-1, eps=1e-6), computed once per
    # pixel tile: the normals output block is resident across the b axis.
    @pl.when(b == 0)
    def _():
        n = n_ref[...].astype(jnp.float32)                # (3, thw)
        sumsq = jnp.sum(n * n, axis=0, keepdims=True)     # (1, thw)
        # x / max(||x||, 1e-6)  ==  x * rsqrt(max(||x||^2, 1e-12))
        nrm_ref[...] = n * jax.lax.rsqrt(jnp.maximum(sumsq, 1e-12))

    nhat = nrm_ref[...]                                   # (3, thw) f32

    # diffuse[j, p] = sum_k L[j, k] * nhat[k, p]   -> (J, thw)   (MXU, K=3)
    s = jax.lax.dot_general(
        l_ref[...], nhat.astype(jnp.bfloat16),
        dimension_numbers=(((1,), (0,)), ((), ())),
        preferred_element_type=jnp.float32)
    s = jnp.clip(s, 0.0, 1.0)

    # colors[c, p] = sum_j C[c, j] * diffuse[j, p] -> (3, thw)
    # (MXU, K=J contraction, N=thw lane-dense)
    colors = jax.lax.dot_general(
        c_ref[...], s.astype(jnp.bfloat16),
        dimension_numbers=(((1,), (0,)), ((), ())),
        preferred_element_type=jnp.float32)

    colorsa = colors * t_ref[...].astype(jnp.float32)     # colors * texels

    # TODO(synk): sRGB_old() is not defined in the reference snippet; the
    # standard linear->sRGB piecewise transform is used here.
    srgb_ref[...] = jnp.where(
        colorsa <= 0.0031308,
        12.92 * colorsa,
        1.055 * jnp.power(jnp.maximum(colorsa, 0.0031308), 1.0 / 2.4) - 0.055)


def _blinn_phong_env_shading(pixel_normals, light_dirs, light_colors, texels,
                             *, max_tile_hw=2048):
    """pixel_normals: (1, H, W, 3); texels: (B, H, W, 3);
       light_dirs / light_colors: (B, J, 3)."""
    B, H, W, _ = texels.shape
    J = light_dirs.shape[1]
    HW = H * W

    # Channels-first, lane-dense hot-path layout (wrapper-side layout plumbing).
    n_cf = pixel_normals.reshape(1, HW, 3).transpose(0, 2, 1)   # (1, 3, HW)
    t_cf = texels.reshape(B, HW, 3).transpose(0, 2, 1)          # (B, 3, HW)
    c_cf = light_colors.transpose(0, 2, 1)                      # (B, 3, J)

    # Pad HW to a multiple of 128 and pick a lane-dense pixel tile.
    hw_pad = pl.cdiv(HW, 128) * 128
    tile_hw = min(hw_pad, max_tile_hw)
    hw_pad = pl.cdiv(hw_pad, tile_hw) * tile_hw
    if hw_pad != HW:
        pad = [(0, 0), (0, 0), (0, hw_pad - HW)]
        n_cf = jnp.pad(n_cf, pad)
        t_cf = jnp.pad(t_cf, pad)

    # bf16 for HBM->VMEM + MXU; f32 accumulation inside the kernel.
    n_cf = n_cf.astype(jnp.bfloat16)
    t_cf = t_cf.astype(jnp.bfloat16)
    l = light_dirs.astype(jnp.bfloat16)                         # (B, J, 3)
    c_cf = c_cf.astype(jnp.bfloat16)                            # (B, 3, J)

    grid = (hw_pad // tile_hw, B)   # i: pixel tiles (parallel), b: batch (arbitrary)

    n_spec = pl.BlockSpec((None, 3, tile_hw), lambda i, b: (0, 0, i))
    t_spec = pl.BlockSpec((None, 3, tile_hw), lambda i, b: (b, 0, i))
    # Whole light arrays resident in VMEM per batch (no J grid axis).
    # NOTE: the (J, thw) diffuse intermediate lives in VMEM; fine for J up to a
    # few thousand directions, chunk over J in-kernel beyond that.
    l_spec = pl.BlockSpec((None, J, 3), lambda i, b: (b, 0, 0))
    c_spec = pl.BlockSpec((None, 3, J), lambda i, b: (b, 0, 0))
    srgb_spec = pl.BlockSpec((None, 3, tile_hw), lambda i, b: (b, 0, i))
    nrm_spec = pl.BlockSpec((None, 3, tile_hw), lambda i, b: (0, 0, i))

    out_shape = (
        jax.ShapeDtypeStruct((B, 3, hw_pad), jnp.float32),   # sRGB(colors * texels)
        jax.ShapeDtypeStruct((1, 3, hw_pad), jnp.float32),   # normalized normals
    )

    srgb, normals = pl.pallas_call(
        _shade_kernel,
        out_shape=out_shape,
        grid_spec=pltpu.PrefetchScalarGridSpec(
            num_scalar_prefetch=0,
            grid=grid,
            in_specs=[n_spec, l_spec, c_spec, t_spec],
            out_specs=[srgb_spec, nrm_spec],
        ),
        compiler_params=pltpu.CompilerParams(
            dimension_semantics=("parallel", "arbitrary")),
    )(n_cf, l, c_cf, t_cf)

    srgb = srgb[:, :, :HW].transpose(0, 2, 1).reshape(B, H, W, 3)
    normals = normals[:, :, :HW].transpose(0, 2, 1).reshape(1, H, W, 3)
    return srgb, normals


# ----------------------------------------------------------------------------
# Full forward pass (glue in plain JAX around the Pallas hot path)
# ----------------------------------------------------------------------------
def blinn_phong_shader_env_map_forward(pixel_normals_raw, texels,
                                       env_directions, env_map, sineweight,
                                       kd, shininess,
                                       pix_to_face, dists,
                                       sigma=1e-4):
    """Mirrors BlinnPhongShaderEnvMap.forward.

    pixel_normals_raw: (1, H, W, 3)   interpolated (unnormalized) pixel normals
    texels:            (B, H, W, 3)   sampled textures (already squeezed)
    env_directions:    (B, J, 3)      envmap.directions
    env_map:           (B, J, 3)      raw environment map
    sineweight:        (B, J, 1)
    kd:                (B, 1, 3)
    shininess:         (B, 1)
    pix_to_face:       (1, H, W, K)   int32, from rasterizer fragments
    dists:             (1, H, W, K)   float32, from rasterizer fragments
    """
    # TODO(synk): interpolate_face_attributes / sample_textures (PyTorch3D
    # rasterizer ops) have no Pallas equivalent here; their outputs are inputs.
    B = env_directions.shape[0]

    kd = jnp.clip(kd, 0.0, 1.0)
    ks = 1.0 - kd                                    # unused (no specular term)
    shin = jnp.clip(shininess, 0.0, 1.0) * 1000.0    # unused (no specular term)
    del ks, shin

    # EnvironmentMap: environment_map * sineweight, then * kd in the shader.
    light_colors = env_map * sineweight * kd         # (B, J, 3)

    colors_srgb, normals_hat = _blinn_phong_env_shading(
        pixel_normals_raw, env_directions, light_colors, texels)

    # pixel_normals.squeeze(3).repeat(B, 1, 1, 1): dedup inside the kernel,
    # broadcast to the batch size only at the output boundary.
    normals_b = jnp.broadcast_to(normals_hat, (B,) + normals_hat.shape[1:])

    # TODO(synk): softmax_rgb_blend is approximated (alpha only, no znear/zfar
    # z-weighting or background handling); only alpha[..., 3] is consumed.
    mask = (pix_to_face >= 0).astype(jnp.float32)
    prob_map = jax.nn.sigmoid(-dists / sigma) * mask
    alpha = 1.0 - jnp.prod(1.0 - prob_map, axis=-1)

    return colors_srgb, texels, normals_b, alpha


# ----------------------------------------------------------------------------
if __name__ == "__main__":
    key = jax.random.PRNGKey(0)
    ks = jax.random.split(key, 9)

    B, H, W, J, Kf = 2, 16, 16, 256, 1   # B env maps, J light directions

    pixel_normals = jax.random.normal(ks[0], (1, H, W, 3), jnp.float32)
    texels = jax.random.uniform(ks[1], (B, H, W, 3), jnp.float32)

    dirs = jax.random.normal(ks[2], (B, J, 3), jnp.float32)
    dirs = dirs / jnp.linalg.norm(dirs, axis=-1, keepdims=True)
    env_map = jax.random.uniform(ks[3], (B, J, 3), jnp.float32)
    sineweight = jax.random.uniform(ks[4], (B, J, 1), jnp.float32)
    kd = jax.random.uniform(ks[5], (B, 1, 3), jnp.float32)
    shininess = jax.random.uniform(ks[6], (B, 1), jnp.float32)

    pix_to_face = jax.random.randint(ks[7], (1, H, W, Kf), -1, 5, jnp.int32)
    dists = jax.random.normal(ks[8], (1, H, W, Kf), jnp.float32) * 1e-4

    colors, texels_out, normals, alpha = blinn_phong_shader_env_map_forward(
        pixel_normals, texels, dirs, env_map, sineweight, kd, shininess,
        pix_to_face, dists)

    jax.block_until_ready((colors, texels_out, normals, alpha))
    assert colors.shape == (B, H, W, 3)
    assert texels_out.shape == (B, H, W, 3)
    assert normals.shape == (B, H, W, 3)
    assert alpha.shape == (1, H, W)
    print("KERNEL_OK")
</pallas_src>

<mosaic_0001>
module attributes {stable_mosaic.version = 11 : i64} {
  func.func @_shade_kernel(%arg0: i32, %arg1: i32, %arg2: memref<1x3x256xbf16, #tpu.memory_space<vmem>>, %arg3: memref<1x256x3xbf16, #tpu.memory_space<vmem>>, %arg4: memref<1x3x256xbf16, #tpu.memory_space<vmem>>, %arg5: memref<1x3x256xbf16, #tpu.memory_space<vmem>>, %arg6: memref<1x3x256xf32, #tpu.memory_space<vmem>>, %arg7: memref<1x3x256xf32, #tpu.memory_space<vmem>>) attributes {dimension_semantics = [#tpu.dimension_semantics<parallel>, #tpu.dimension_semantics<arbitrary>], iteration_bounds = array<i64: 1, 2>, scalar_prefetch = 0 : i64, scratch_operands = 0 : i64, tpu.core_type = #tpu.core_type<tc>, window_params = [{transform_indices = @transform_0, window_bounds = array<i64: 1, 3, 256>}, {transform_indices = @transform_1, window_bounds = array<i64: 1, 256, 3>}, {transform_indices = @transform_2, window_bounds = array<i64: 1, 3, 256>}, {transform_indices = @transform_3, window_bounds = array<i64: 1, 3, 256>}, {transform_indices = @transform_4, window_bounds = array<i64: 1, 3, 256>}, {transform_indices = @transform_5, window_bounds = array<i64: 1, 3, 256>}]} {
    %c0_i32 = arith.constant 0 : i32
    %0 = arith.cmpi eq, %arg1, %c0_i32 : i32
    %1 = arith.extui %0 : i1 to i32
    %c0_i32_0 = arith.constant 0 : i32
    %2 = arith.cmpi ne, %1, %c0_i32_0 : i32
    scf.if %2 {
      %c0_24 = arith.constant 0 : index
      %c0_25 = arith.constant 0 : index
      %c0_26 = arith.constant 0 : index
      %37 = vector.load %arg2[%c0_24, %c0_25, %c0_26] : memref<1x3x256xbf16, #tpu.memory_space<vmem>>, vector<1x3x256xbf16>
      %38 = vector.shape_cast %37 : vector<1x3x256xbf16> to vector<3x256xbf16>
      %39 = arith.extf %38 : vector<3x256xbf16> to vector<3x256xf32>
      %40 = arith.mulf %39, %39 : vector<3x256xf32>
      %cst_27 = arith.constant dense<0.000000e+00> : vector<256xf32>
      %41 = vector.multi_reduction <add>, %40, %cst_27 [0] : vector<3x256xf32> to vector<256xf32>
      %42 = vector.shape_cast %41 : vector<256xf32> to vector<1x256xf32>
      %cst_28 = arith.constant 9.99999996E-13 : f32
      %43 = vector.broadcast %cst_28 : f32 to vector<1x256xf32>
      %44 = arith.maximumf %42, %43 : vector<1x256xf32>
      %45 = math.rsqrt %44 : vector<1x256xf32>
      %46 = vector.broadcast %45 : vector<1x256xf32> to vector<3x256xf32>
      %47 = arith.mulf %39, %46 : vector<3x256xf32>
      %c0_29 = arith.constant 0 : index
      %c0_30 = arith.constant 0 : index
      %c0_31 = arith.constant 0 : index
      %48 = vector.load %arg7[%c0_29, %c0_30, %c0_31] : memref<1x3x256xf32, #tpu.memory_space<vmem>>, vector<1x3x256xf32>
      %49 = vector.shape_cast %48 : vector<1x3x256xf32> to vector<3x256xf32>
      %50 = vector.shape_cast %47 : vector<3x256xf32> to vector<1x3x256xf32>
      tpu.vector_store %arg7[%c0_29, %c0_30, %c0_31], %50 {strides = array<i32>} : memref<1x3x256xf32, #tpu.memory_space<vmem>>, vector<1x3x256xf32>,
    } else {
    }
    %c0 = arith.constant 0 : index
    %c0_1 = arith.constant 0 : index
    %c0_2 = arith.constant 0 : index
    %3 = vector.load %arg7[%c0, %c0_1, %c0_2] : memref<1x3x256xf32, #tpu.memory_space<vmem>>, vector<1x3x256xf32>
    %4 = vector.shape_cast %3 : vector<1x3x256xf32> to vector<3x256xf32>
    %c0_3 = arith.constant 0 : index
    %c0_4 = arith.constant 0 : index
    %c0_5 = arith.constant 0 : index
    %5 = vector.load %arg3[%c0_3, %c0_4, %c0_5] : memref<1x256x3xbf16, #tpu.memory_space<vmem>>, vector<1x256x3xbf16>
    %6 = vector.shape_cast %5 : vector<1x256x3xbf16> to vector<256x3xbf16>
    %7 = arith.truncf %4 : vector<3x256xf32> to vector<3x256xbf16>
    %cst = arith.constant dense<0.000000e+00> : vector<256x256xf32>
    %8 = tpu.matmul %6, %7, %cst {dimension_numbers = #tpu.dot_dimension_numbers<[1], [0], [0], [1], [0, 0, 1, 1], [], []>} : vector<256x3xbf16>, vector<3x256xbf16>, vector<256x256xf32> -> vector<256x256xf32>
    %cst_6 = arith.constant 0.000000e+00 : f32
    %cst_7 = arith.constant 1.000000e+00 : f32
    %9 = vector.broadcast %cst_6 : f32 to vector<256x256xf32>
    %10 = arith.maximumf %9, %8 : vector<256x256xf32>
    %11 = vector.broadcast %cst_7 : f32 to vector<256x256xf32>
    %12 = arith.minimumf %11, %10 : vector<256x256xf32>
    %c0_8 = arith.constant 0 : index
    %c0_9 = arith.constant 0 : index
    %c0_10 = arith.constant 0 : index
    %13 = vector.load %arg4[%c0_8, %c0_9, %c0_10] : memref<1x3x256xbf16, #tpu.memory_space<vmem>>, vector<1x3x256xbf16>
    %14 = vector.shape_cast %13 : vector<1x3x256xbf16> to vector<3x256xbf16>
    %15 = arith.truncf %12 : vector<256x256xf32> to vector<256x256xbf16>
    %cst_11 = arith.constant dense<0.000000e+00> : vector<3x256xf32>
    %16 = tpu.matmul %14, %15, %cst_11 {dimension_numbers = #tpu.dot_dimension_numbers<[1], [0], [0], [1], [0, 0, 1, 1], [], []>} : vector<3x256xbf16>, vector<256x256xbf16>, vector<3x256xf32> -> vector<3x256xf32>
    %c0_12 = arith.constant 0 : index
    %c0_13 = arith.constant 0 : index
    %c0_14 = arith.constant 0 : index
    %17 = vector.load %arg5[%c0_12, %c0_13, %c0_14] : memref<1x3x256xbf16, #tpu.memory_space<vmem>>, vector<1x3x256xbf16>
    %18 = vector.shape_cast %17 : vector<1x3x256xbf16> to vector<3x256xbf16>
    %19 = arith.extf %18 : vector<3x256xbf16> to vector<3x256xf32>
    %20 = arith.mulf %16, %19 : vector<3x256xf32>
    %cst_15 = arith.constant 3.130800e-03 : f32
    %21 = vector.broadcast %cst_15 : f32 to vector<3x256xf32>
    %22 = arith.cmpf ole, %20, %21 : vector<3x256xf32>
    %cst_16 = arith.constant 1.292000e+01 : f32
    %23 = vector.broadcast %cst_16 : f32 to vector<3x256xf32>
    %24 = arith.mulf %23, %20 : vector<3x256xf32>
    %cst_17 = arith.constant 3.130800e-03 : f32
    %25 = vector.broadcast %cst_17 : f32 to vector<3x256xf32>
    %26 = arith.maximumf %20, %25 : vector<3x256xf32>
    %cst_18 = arith.constant 0.416666657 : f32
    %27 = vector.broadcast %cst_18 : f32 to vector<3x256xf32>
    %28 = math.powf %26, %27 : vector<3x256xf32>
    %cst_19 = arith.constant 1.055000e+00 : f32
    %29 = vector.broadcast %cst_19 : f32 to vector<3x256xf32>
    %30 = arith.mulf %29, %28 : vector<3x256xf32>
    %cst_20 = arith.constant 5.500000e-02 : f32
    %31 = vector.broadcast %cst_20 : f32 to vector<3x256xf32>
    %32 = arith.subf %30, %31 : vector<3x256xf32>
    %33 = arith.select %22, %24, %32 : vector<3x256xi1>, vector<3x256xf32>
    %c0_21 = arith.constant 0 : index
    %c0_22 = arith.constant 0 : index
    %c0_23 = arith.constant 0 : index
    %34 = vector.load %arg6[%c0_21, %c0_22, %c0_23] : memref<1x3x256xf32, #tpu.memory_space<vmem>>, vector<1x3x256xf32>
    %35 = vector.shape_cast %34 : vector<1x3x256xf32> to vector<3x256xf32>
    %36 = vector.shape_cast %33 : vector<3x256xf32> to vector<1x3x256xf32>
    tpu.vector_store %arg6[%c0_21, %c0_22, %c0_23], %36 {strides = array<i32>} : memref<1x3x256xf32, #tpu.memory_space<vmem>>, vector<1x3x256xf32>,
    return
  }
  func.func @transform_0(%arg0: i32, %arg1: i32) -> (i32, i32, i32) {
    %c0_i32 = arith.constant 0 : i32
    %c0_i32_0 = arith.constant 0 : i32
    %c0_i32_1 = arith.constant 0 : i32
    return %c0_i32, %c0_i32_0, %arg0 : i32, i32, i32
  }
  func.func @transform_1(%arg0: i32, %arg1: i32) -> (i32, i32, i32) {
    %c0_i32 = arith.constant 0 : i32
    %c0_i32_0 = arith.constant 0 : i32
    %c0_i32_1 = arith.constant 0 : i32
    return %arg1, %c0_i32, %c0_i32_0 : i32, i32, i32
  }
  func.func @transform_2(%arg0: i32, %arg1: i32) -> (i32, i32, i32) {
    %c0_i32 = arith.constant 0 : i32
    %c0_i32_0 = arith.constant 0 : i32
    %c0_i32_1 = arith.constant 0 : i32
    return %arg1, %c0_i32, %c0_i32_0 : i32, i32, i32
  }
  func.func @transform_3(%arg0: i32, %arg1: i32) -> (i32, i32, i32) {
    %c0_i32 = arith.constant 0 : i32
    %c0_i32_0 = arith.constant 0 : i32
    return %arg1, %c0_i32, %arg0 : i32, i32, i32
  }
  func.func @transform_4(%arg0: i32, %arg1: i32) -> (i32, i32, i32) {
    %c0_i32 = arith.constant 0 : i32
    %c0_i32_0 = arith.constant 0 : i32
    return %arg1, %c0_i32, %arg0 : i32, i32, i32
  }
  func.func @transform_5(%arg0: i32, %arg1: i32) -> (i32, i32, i32) {
    %c0_i32 = arith.constant 0 : i32
    %c0_i32_0 = arith.constant 0 : i32
    %c0_i32_1 = arith.constant 0 : i32
    return %c0_i32, %c0_i32_0, %arg0 : i32, i32, i32
  }
}

</mosaic_0001>

<llo_original>
// kernel: tpu_custom_call.1
$region0: #{tpu_custom_call.1}
  #allocation0 [shape = 'u32[]', space=smem, size = 0x4, offset = 0x4, fixed_abs, tag = 'smem constant byte address 0x4 - core index']
  #allocation1 [shape = 'u32[144,128]{1,0:T(1,128)}', space=vmem, size = 0x12000, scoped, tag = 'internal scratch']
  %s0 = inlined_call_operand.vmem [shape: bf16[1,3,256], index: 0, kind: input, shape index: {}]
  %s1 = inlined_call_operand.vmem [shape: bf16[2,256,3], index: 1, kind: input, shape index: {}]
  %s2 = inlined_call_operand.vmem [shape: bf16[2,3,256], index: 2, kind: input, shape index: {}]
  %s3 = inlined_call_operand.vmem [shape: bf16[2,3,256], index: 3, kind: input, shape index: {}]
  %s4 = inlined_call_operand.vmem [shape: f32[2,3,256], index: 4, kind: output, shape index: {0}]
  %s5 = inlined_call_operand.vmem [shape: f32[1,3,256], index: 5, kind: output, shape index: {1}]
  %6 = xla_tuple %s4, %s5
  %s7 = sld [smem:[#allocation0]]
  $region61: #{tpu_custom_call.1} parent=0
    _
  %s9 = ssub.s32 1, %s7
  %s10 = scalar_select 0, %s9, %s7
  loop: start=0, step=1, limit=4
  $region2: #{tpu_custom_call.1} parent=0 // loop_pre_header
    _
  $region3: #{tpu_custom_call.1} parent=0 // loop_header
    %s12 = sphi 0, %s16
    %p13 = scmp.ge.s32.totalorder %s12, 4
    %s19 = sphi 0, %s31
    %s20 = sphi 0, %s27
    %s21 = sphi 0, %s19
    %s22 = sphi 0, %s20
    %s23 = sphi 0, %s21
    %s24 = sphi 0, %s22
    %s34 = sphi 0, %s36
    %s37 = sphi 0, %s34
    %s38 = sphi 0, %s37
    %s54 = sphi 0, %s38
    %s60 = sphi 0, %s62
    %s63 = sphi 0, %s60
    %s64 = sphi 0, %s63
    %s80 = sphi 0, %s64
    %s86 = sphi 0, %s88
    %s89 = sphi 0, %s86
    %s90 = sphi 0, %s89
    %s106 = sphi 0, %s90
    %s114 = sphi 0, %s116
    %s117 = sphi 0, %s114
    %s118 = sphi 0, %s117
    %s134 = sphi 0, %s118
    %s142 = sphi 0, %s144
    %s145 = sphi 0, %s142
    %s146 = sphi 0, %s145
    %s162 = sphi 0, %s146
    %s168 = sphi 0, %s170
    %s171 = sphi 0, %s168
    %s172 = sphi 0, %s171
    %s188 = sphi 0, %s172
  $region4: #{tpu_custom_call.1} parent=0 // loop_header_branch
    %15 = sbr.rel (%p13) target = $region8
  $region5: #{tpu_custom_call.1} parent=0 // loop_body
    %s17 = ssub.s32 %s12, 1
    %s18 = ssub.s32 %s12, 2
    %s25 = sadd.s32 1, %s20
    %p26 = scmp.ge.s32.totalorder %s25, 2
    %s27 = scalar_select %p26, 0, %s25
    %s28 = sadd.s32 1, %s19
    %s29 = scalar_select %p26, %s28, %s19
    %p30 = scmp.ge.s32.totalorder %s29, 1
    %s31 = scalar_select %p30, 0, %s29
    %s32 = ssub.s32 %s19, %s31
    %p33 = scmp.eq.s32.totalorder %s32, 0
    %s35 = sadd.s32 %s34, 1
    %s36 = scalar_select %p33, %s34, %s35
    %p39 = pneg %p33
    %p40 = scmp.eq.s32.totalorder %s12, 1
    %p41 = por %p39, %p40
    %p42 = scmp.ne.s32.totalorder %s34, %s37
    %p43 = scmp.eq.s32.totalorder %s12, 0
    %p44 = por %p42, %p43
    %p45 = scmp.ne.s32.totalorder %s34, %s37
    %p46 = scmp.eq.s32.totalorder %s17, 1
    %p47 = por %p45, %p46
    %p48 = scmp.ne.s32.totalorder %s37, %s38
    %p49 = scmp.eq.s32.totalorder %s17, 0
    %p50 = por %p48, %p49
    %p51 = scmp.ne.s32.totalorder %s37, %s38
    %p52 = scmp.eq.s32.totalorder %s18, 1
    %p53 = por %p51, %p52
    %p55 = scmp.ne.s32.totalorder %s38, %s54
    %p56 = scmp.eq.s32.totalorder %s18, 0
    %p57 = por %p55, %p56
    %s58 = ssub.s32 %s20, %s27
    %p59 = scmp.eq.s32.totalorder %s58, 0
    %s61 = sadd.s32 %s60, 1
    %s62 = scalar_select %p59, %s60, %s61
    %p65 = pneg %p59
    %p66 = scmp.eq.s32.totalorder %s12, 1
    %p67 = por %p65, %p66
    %p68 = scmp.ne.s32.totalorder %s60, %s63
    %p69 = scmp.eq.s32.totalorder %s12, 0
    %p70 = por %p68, %p69
    %p71 = scmp.ne.s32.totalorder %s60, %s63
    %p72 = scmp.eq.s32.totalorder %s17, 1
    %p73 = por %p71, %p72
    %p74 = scmp.ne.s32.totalorder %s63, %s64
    %p75 = scmp.eq.s32.totalorder %s17, 0
    %p76 = por %p74, %p75
    %p77 = scmp.ne.s32.totalorder %s63, %s64
    %p78 = scmp.eq.s32.totalorder %s18, 1
    %p79 = por %p77, %p78
    %p81 = scmp.ne.s32.totalorder %s64, %s80
    %p82 = scmp.eq.s32.totalorder %s18, 0
    %p83 = por %p81, %p82
    %s84 = ssub.s32 %s20, %s27
    %p85 = scmp.eq.s32.totalorder %s84, 0
    %s87 = sadd.s32 %s86, 1
    %s88 = scalar_select %p85, %s86, %s87
    %p91 = pneg %p85
    %p92 = scmp.eq.s32.totalorder %s12, 1
    %p93 = por %p91, %p92
    %p94 = scmp.ne.s32.totalorder %s86, %s89
    %p95 = scmp.eq.s32.totalorder %s12, 0
    %p96 = por %p94, %p95
    %p97 = scmp.ne.s32.totalorder %s86, %s89
    %p98 = scmp.eq.s32.totalorder %s17, 1
    %p99 = por %p97, %p98
    %p100 = scmp.ne.s32.totalorder %s89, %s90
    %p101 = scmp.eq.s32.totalorder %s17, 0
    %p102 = por %p100, %p101
    %p103 = scmp.ne.s32.totalorder %s89, %s90
    %p104 = scmp.eq.s32.totalorder %s18, 1
    %p105 = por %p103, %p104
    %p107 = scmp.ne.s32.totalorder %s90, %s106
    %p108 = scmp.eq.s32.totalorder %s18, 0
    %p109 = por %p107, %p108
    %s110 = ssub.s32 %s20, %s27
    %s111 = ssub.s32 %s19, %s31
    %s112 = sor.u32 %s110, %s111
    %p113 = scmp.eq.s32.totalorder %s112, 0
    %s115 = sadd.s32 %s114, 1
    %s116 = scalar_select %p113, %s114, %s115
    %p119 = pneg %p113
    %p120 = scmp.eq.s32.totalorder %s12, 1
    %p121 = por %p119, %p120
    %p122 = scmp.ne.s32.totalorder %s114, %s117
    %p123 = scmp.eq.s32.totalorder %s12, 0
    %p124 = por %p122, %p123
    %p125 = scmp.ne.s32.totalorder %s114, %s117
    %p126 = scmp.eq.s32.totalorder %s17, 1
    %p127 = por %p125, %p126
    %p128 = scmp.ne.s32.totalorder %s117, %s118
    %p129 = scmp.eq.s32.totalorder %s17, 0
    %p130 = por %p128, %p129
    %p131 = scmp.ne.s32.totalorder %s117, %s118
    %p132 = scmp.eq.s32.totalorder %s18, 1
    %p133 = por %p131, %p132
    %p135 = scmp.ne.s32.totalorder %s118, %s134
    %p136 = scmp.eq.s32.totalorder %s18, 0
    %p137 = por %p135, %p136
    %s138 = ssub.s32 %s20, %s27
    %s139 = ssub.s32 %s19, %s31
    %s140 = sor.u32 %s138, %s139
    %p141 = scmp.eq.s32.totalorder %s140, 0
    %s143 = sadd.s32 %s142, 1
    %s144 = scalar_select %p141, %s142, %s143
    %p147 = pneg %p141
    %p148 = scmp.eq.s32.totalorder %s12, 1
    %p149 = por %p147, %p148
    %p150 = scmp.ne.s32.totalorder %s142, %s145
    %p151 = scmp.eq.s32.totalorder %s12, 0
    %p152 = por %p150, %p151
    %p153 = scmp.ne.s32.totalorder %s142, %s145
    %p154 = scmp.eq.s32.totalorder %s17, 1
    %p155 = por %p153, %p154
    %p156 = scmp.ne.s32.totalorder %s145, %s146
    %p157 = scmp.eq.s32.totalorder %s17, 0
    %p158 = por %p156, %p157
    %p159 = scmp.ne.s32.totalorder %s145, %s146
    %p160 = scmp.eq.s32.totalorder %s18, 1
    %p161 = por %p159, %p160
    %p163 = scmp.ne.s32.totalorder %s146, %s162
    %p164 = scmp.eq.s32.totalorder %s18, 0
    %p165 = por %p163, %p164
    %s166 = ssub.s32 %s19, %s31
    %p167 = scmp.eq.s32.totalorder %s166, 0
    %s169 = sadd.s32 %s168, 1
    %s170 = scalar_select %p167, %s168, %s169
    %p173 = pneg %p167
    %p174 = scmp.eq.s32.totalorder %s12, 1
    %p175 = por %p173, %p174
    %p176 = scmp.ne.s32.totalorder %s168, %s171
    %p177 = scmp.eq.s32.totalorder %s12, 0
    %p178 = por %p176, %p177
    %p179 = scmp.ne.s32.totalorder %s168, %s171
    %p180 = scmp.eq.s32.totalorder %s17, 1
    %p181 = por %p179, %p180
    %p182 = scmp.ne.s32.totalorder %s171, %s172
    %p183 = scmp.eq.s32.totalorder %s17, 0
    %p184 = por %p182, %p183
    %p185 = scmp.ne.s32.totalorder %s171, %s172
    %p186 = scmp.eq.s32.totalorder %s18, 1
    %p187 = por %p185, %p186
    %p189 = scmp.ne.s32.totalorder %s172, %s188
    %p190 = scmp.eq.s32.totalorder %s18, 0
    %p191 = por %p189, %p190
    %p192 = scmp.le.s32.totalorder 1, %s12
    %p193 = scmp.lt.s32.totalorder %s12, 3
    %p194 = pnand %p192, %p193
    %p195 = pneg %p194
    // Predicated region
    $region9: #{tpu_custom_call.1} parent=5 // pred_check
      _
    $region10: #{tpu_custom_call.1} parent=5 // pred_check_branch
      %197 = sbr.rel (%p194) target = $region12
    $region11: #{tpu_custom_call.1} parent=5 // pred_region
      %s198 = ssub.s32 %s12, 1
      // Predicated region
      $region13: #{tpu_custom_call.1} parent=11 // pred_check
        %p199 = pneg %p50
      $region14: #{tpu_custom_call.1} parent=11 // pred_check_branch
        %201 = sbr.rel (%p199) target = $region16
      $region15: #{tpu_custom_call.1} parent=11 // pred_region
        %s202 = smul.u32 2, %s21
        %p203 = scmp.lt.s32.totalorder %s202, 1
        %s204 = scalar_select %p203, %s202, 1
        %s205 = smul.addr %s204, 2
        %s206 = scalar_lea.vmem %s0, %s205
        %s207 = smul.u32 2, %s21
      $region16: #{tpu_custom_call.1} parent=11 // pred_fallthru
        _
    $region12: #{tpu_custom_call.1} parent=5 // pred_fallthru
      _
    %p208 = scmp.lt.s32.totalorder %s12, 2
    // Predicated region
    $region17: #{tpu_custom_call.1} parent=5 // pred_check
      %p209 = pneg %p208
    $region18: #{tpu_custom_call.1} parent=5 // pred_check_branch
      %211 = sbr.rel (%p209) target = $region20
    $region19: #{tpu_custom_call.1} parent=5 // pred_region
      // Predicated region
      $region21: #{tpu_custom_call.1} parent=19 // pred_check
        %p212 = pneg %p70
      $region22: #{tpu_custom_call.1} parent=19 // pred_check_branch
        %214 = sbr.rel (%p212) target = $region24
      $region23: #{tpu_custom_call.1} parent=19 // pred_region
        %p215 = scmp.lt.s32.totalorder %s20, 1
        %s216 = scalar_select %p215, %s20, 1
        %s217 = smul.addr %s216, 32
        %s218 = smul.addr %s217, 4
        %s219 = scalar_lea.vmem %s1, %s218
      $region24: #{tpu_custom_call.1} parent=19 // pred_fallthru
        _
      // Predicated region
      $region25: #{tpu_custom_call.1} parent=19 // pred_check
        %p220 = pneg %p96
      $region26: #{tpu_custom_call.1} parent=19 // pred_check_branch
        %222 = sbr.rel (%p220) target = $region28
      $region27: #{tpu_custom_call.1} parent=19 // pred_region
        %p223 = scmp.lt.s32.totalorder %s20, 1
        %s224 = scalar_select %p223, %s20, 1
        %s225 = smul.addr %s224, 2
        %s226 = smul.addr %s225, 2
        %s227 = scalar_lea.vmem %s2, %s226
      $region28: #{tpu_custom_call.1} parent=19 // pred_fallthru
        _
      // Predicated region
      $region29: #{tpu_custom_call.1} parent=19 // pred_check
        %p228 = pneg %p124
      $region30: #{tpu_custom_call.1} parent=19 // pred_check_branch
        %230 = sbr.rel (%p228) target = $region32
      $region31: #{tpu_custom_call.1} parent=19 // pred_region
        %s231 = smul.u32 2, %s19
        %p232 = scmp.lt.s32.totalorder %s20, 1
        %s233 = scalar_select %p232, %s20, 1
        %p234 = scmp.lt.s32.totalorder %s231, 1
        %s235 = scalar_select %p234, %s231, 1
        %s236 = smul.addr %s233, 2
        %s237 = sadd.s32 %s235, %s236
        %s238 = smul.addr %s237, 2
        %s239 = scalar_lea.vmem %s3, %s238
        %s240 = smul.u32 2, %s19
      $region32: #{tpu_custom_call.1} parent=19 // pred_fallthru
        _
    $region20: #{tpu_custom_call.1} parent=5 // pred_fallthru
      _
    %p241 = scmp.le.s32.totalorder 1, %s12
    %p242 = scmp.lt.s32.totalorder %s12, 3
    %p243 = pnand %p241, %p242
    %p244 = pneg %p243
    // Predicated region
    $region33: #{tpu_custom_call.1} parent=5 // pred_check
      _
    $region34: #{tpu_custom_call.1} parent=5 // pred_check_branch
      %246 = sbr.rel (%p243) target = $region36
    $region35: #{tpu_custom_call.1} parent=5 // pred_region
      %s247 = ssub.s32 %s12, 1
      %s248 = smul.u32 2, %s21
      %p249 = scmp.lt.s32.totalorder %s248, 1
      %s250 = scalar_select %p249, %s248, 1
      %s251 = smul.addr %s250, 2
      %s252 = scalar_lea.vmem %s0, %s251
      %p253 = pneg %p50
      %p254 = pneg %p47
      %p255 = scmp.lt.s32.totalorder %s22, 1
      %s256 = scalar_select %p255, %s22, 1
      %s257 = smul.addr %s256, 32
      %s258 = smul.addr %s257, 4
      %s259 = scalar_lea.vmem %s1, %s258
      %p260 = pneg %p76
      %p261 = pneg %p73
      %p262 = scmp.lt.s32.totalorder %s22, 1
      %s263 = scalar_select %p262, %s22, 1
      %s264 = smul.addr %s263, 2
      %s265 = smul.addr %s264, 2
      %s266 = scalar_lea.vmem %s2, %s265
      %p267 = pneg %p102
      %p268 = pneg %p99
      %s269 = smul.u32 2, %s21
      %p270 = scmp.lt.s32.totalorder %s22, 1
      %s271 = scalar_select %p270, %s22, 1
      %p272 = scmp.lt.s32.totalorder %s269, 1
      %s273 = scalar_select %p272, %s269, 1
      %s274 = smul.addr %s271, 2
      %s275 = sadd.s32 %s273, %s274
      %s276 = smul.addr %s275, 2
      %s277 = scalar_lea.vmem %s3, %s276
      %p278 = pneg %p130
      %p279 = pneg %p127
      %p280 = pneg %p158
      %p281 = pneg %p155
      %s282 = smul.u32 2, %s21
      %p283 = scmp.lt.s32.totalorder %s22, 1
      %s284 = scalar_select %p283, %s22, 1
      %p285 = scmp.lt.s32.totalorder %s282, 1
      %s286 = scalar_select %p285, %s282, 1
      %s287 = smul.addr %s284, 2
      %s288 = sadd.s32 %s286, %s287
      %s289 = smul.addr %s288, 4
      %s290 = scalar_lea.vmem %s4, %s289
      %p291 = pneg %p184
      %p292 = pneg %p181
      %s293 = smul.u32 2, %s21
      %p294 = scmp.lt.s32.totalorder %s293, 1
      %s295 = scalar_select %p294, %s293, 1
      %s296 = smul.addr %s295, 4
      %s297 = scalar_lea.vmem %s5, %s296
      %s298 = smul.u32 2, %s21
      %p299 = scmp.lt.s32.totalorder %s298, 1
      %s300 = scalar_select %p299, %s298, 1
      %s301 = smul.addr %s300, 2
      %s302 = scalar_lea.vmem %s0, %s301
      %s303 = smul.u32 2, %s21
      %p304 = scmp.lt.s32.totalorder %s22, 1
      %s305 = scalar_select %p304, %s22, 1
      %s306 = smul.addr %s305, 32
      %s307 = smul.addr %s306, 4
      %s308 = scalar_lea.vmem %s1, %s307
      %p309 = scmp.lt.s32.totalorder %s22, 1
      %s310 = scalar_select %p309, %s22, 1
      %s311 = smul.addr %s310, 2
      %s312 = smul.addr %s311, 2
      %s313 = scalar_lea.vmem %s2, %s312
      %s314 = smul.u32 2, %s21
      %p315 = scmp.lt.s32.totalorder %s22, 1
      %s316 = scalar_select %p315, %s22, 1
      %p317 = scmp.lt.s32.totalorder %s314, 1
      %s318 = scalar_select %p317, %s314, 1
      %s319 = smul.addr %s316, 2
      %s320 = sadd.s32 %s318, %s319
      %s321 = smul.addr %s320, 2
      %s322 = scalar_lea.vmem %s3, %s321
      %s323 = smul.u32 2, %s21
      %s324 = smul.u32 2, %s21
      %p325 = scmp.lt.s32.totalorder %s22, 1
      %s326 = scalar_select %p325, %s22, 1
      %p327 = scmp.lt.s32.totalorder %s324, 1
      %s328 = scalar_select %p327, %s324, 1
      %s329 = smul.addr %s326, 2
      %s330 = sadd.s32 %s328, %s329
      %s331 = smul.addr %s330, 4
      %s332 = scalar_lea.vmem %s4, %s331
      %s333 = smul.u32 2, %s21
      %s334 = smul.u32 2, %s21
      %p335 = scmp.lt.s32.totalorder %s334, 1
      %s336 = scalar_select %p335, %s334, 1
      %s337 = smul.addr %s336, 4
      %s338 = scalar_lea.vmem %s5, %s337
      %s339 = smul.u32 2, %s21
      %p341 = scmp.eq.s32.totalorder %s22, 0
      // Predicated region
      $region37: #{tpu_custom_call.1} parent=35 // pred_check
        %p342 = pneg %p341
      $region38: #{tpu_custom_call.1} parent=35 // pred_check_branch
        %344 = sbr.rel (%p342) target = $region40
      $region39: #{tpu_custom_call.1} parent=35 // pred_region
        %v345 = vld [vmem:[%s302] sm:$0xf]
        %v346 = vunpack.c.l.bf16 %v345
        %v347 = vmul.f32 %v346, %v346
        %v349 = vcombine.high %v347, %v347
        %vm351 = vcmask 1042432
        %v352 = vsel %vm351, %v347, 0.0
        %v353 = vrot.slane %v352, 4
        %v354 = vadd.f32 %v352, %v353
        %v355 = vrot.slane %v354, 2
        %v356 = vadd.f32 %v354, %v355
        %v357 = vrot.slane %v356, 1
        %v358 = vadd.f32 %v356, %v357
        %v359 = vsel %vm351, %v349, 0.0
        %v360 = vrot.slane %v359, 4
        %v361 = vadd.f32 %v359, %v360
        %v362 = vrot.slane %v361, 2
        %v363 = vadd.f32 %v361, %v362
        %v364 = vrot.slane %v363, 1
        %v365 = vadd.f32 %v363, %v364
        %v366 = vmax.f32 %v358, 1e-12
        %v367 = vmax.f32 %v365, 1e-12
        %v368 = vrsqrt.pop %v366
        %v369 = vrsqrt.pop %v367
        %v372 = vcombine.low %v368, %v369
        %v374 = vmul.f32 %v346, %v372
        %375 = vst [vmem:[%s338] sm:$0x77] %v374
      $region40: #{tpu_custom_call.1} parent=35 // pred_fallthru
        _
      %v376 = vld [vmem:[%s338] sm:$0x77]
      %v377 = vld [vmem:[%s308] sm:$0xf]
      %v378 = vld [vmem:[%s308 + $0x4] sm:$0xf]
      %v379 = vld [vmem:[%s308 + $0x8] sm:$0xf]
      %v380 = vld [vmem:[%s308 + $0xc] sm:$0xf]
      %v381 = vld [vmem:[%s308 + $0x10] sm:$0xf]
      %v382 = vld [vmem:[%s308 + $0x14] sm:$0xf]
      %v383 = vld [vmem:[%s308 + $0x18] sm:$0xf]
      %v384 = vld [vmem:[%s308 + $0x1c] sm:$0xf]
      %v385 = vld [vmem:[%s308 + $0x20] sm:$0xf]
      %v386 = vld [vmem:[%s308 + $0x24] sm:$0xf]
      %v387 = vld [vmem:[%s308 + $0x28] sm:$0xf]
      %v388 = vld [vmem:[%s308 + $0x2c] sm:$0xf]
      %v389 = vld [vmem:[%s308 + $0x30] sm:$0xf]
      %v390 = vld [vmem:[%s308 + $0x34] sm:$0xf]
      %v391 = vld [vmem:[%s308 + $0x38] sm:$0xf]
      %v392 = vld [vmem:[%s308 + $0x3c] sm:$0xf]
      %v393 = vld [vmem:[%s308 + $0x40] sm:$0xf]
      %v394 = vld [vmem:[%s308 + $0x44] sm:$0xf]
      %v395 = vld [vmem:[%s308 + $0x48] sm:$0xf]
      %v396 = vld [vmem:[%s308 + $0x4c] sm:$0xf]
      %v397 = vld [vmem:[%s308 + $0x50] sm:$0xf]
      %v398 = vld [vmem:[%s308 + $0x54] sm:$0xf]
      %v399 = vld [vmem:[%s308 + $0x58] sm:$0xf]
      %v400 = vld [vmem:[%s308 + $0x5c] sm:$0xf]
      %v401 = vld [vmem:[%s308 + $0x60] sm:$0xf]
      %v402 = vld [vmem:[%s308 + $0x64] sm:$0xf]
      %v403 = vld [vmem:[%s308 + $0x68] sm:$0xf]
      %v404 = vld [vmem:[%s308 + $0x6c] sm:$0xf]
      %v405 = vld [vmem:[%s308 + $0x70] sm:$0xf]
      %v406 = vld [vmem:[%s308 + $0x74] sm:$0xf]
      %v407 = vld [vmem:[%s308 + $0x78] sm:$0xf]
      %v408 = vld [vmem:[%s308 + $0x7c] sm:$0xf]
      %v410 = vcombine.high %v376, %v376
      %v412 = vpack.c.bf16 %v376, %v376
      %v413 = vpack.c.bf16 %v410, %v410
      %v446 = vunpack.c.l.b16 %v377
      %v447 = vunpack.c.l.b16 %v378
      %v448 = vunpack.c.l.b16 %v379
      %v449 = vunpack.c.l.b16 %v380
      %v450 = vunpack.c.l.b16 %v381
      %v451 = vunpack.c.l.b16 %v382
      %v452 = vunpack.c.l.b16 %v383
      %v453 = vunpack.c.l.b16 %v384
      %v454 = vunpack.c.l.b16 %v385
      %v455 = vunpack.c.l.b16 %v386
      %v456 = vunpack.c.l.b16 %v387
      %v457 = vunpack.c.l.b16 %v388
      %v458 = vunpack.c.l.b16 %v389
      %v459 = vunpack.c.l.b16 %v390
      %v460 = vunpack.c.l.b16 %v391
      %v461 = vunpack.c.l.b16 %v392
      %v462 = vunpack.c.l.b16 %v393
      %v463 = vunpack.c.l.b16 %v394
      %v464 = vunpack.c.l.b16 %v395
      %v465 = vunpack.c.l.b16 %v396
      %v466 = vunpack.c.l.b16 %v397
      %v467 = vunpack.c.l.b16 %v398
      %v468 = vunpack.c.l.b16 %v399
      %v469 = vunpack.c.l.b16 %v400
      %v470 = vunpack.c.l.b16 %v401
      %v471 = vunpack.c.l.b16 %v402
      %v472 = vunpack.c.l.b16 %v403
      %v473 = vunpack.c.l.b16 %v404
      %v474 = vunpack.c.l.b16 %v405
      %v475 = vunpack.c.l.b16 %v406
      %v476 = vunpack.c.l.b16 %v407
      %v477 = vunpack.c.l.b16 %v408
      %v478 = vpack.c.b16 %v447, %v446
      %v479 = vpack.c.b16 %v449, %v448
      %v480 = vpack.c.b16 %v451, %v450
      %v481 = vpack.c.b16 %v453, %v452
      %v482 = vpack.c.b16 %v455, %v454
      %v483 = vpack.c.b16 %v457, %v456
      %v484 = vpack.c.b16 %v459, %v458
      %v485 = vpack.c.b16 %v461, %v460
      %v486 = vpack.c.b16 %v463, %v462
      %v487 = vpack.c.b16 %v465, %v464
      %v488 = vpack.c.b16 %v467, %v466
      %v489 = vpack.c.b16 %v469, %v468
      %v490 = vpack.c.b16 %v471, %v470
      %v491 = vpack.c.b16 %v473, %v472
      %v492 = vpack.c.b16 %v475, %v474
      %v493 = vpack.c.b16 %v477, %v476
      %vm494 = vcmask 23552
      %v496 = vsel %vm494, %v478, 0
      %v499 = vsel %vm494, %v479, 0
      %v502 = vsel %vm494, %v480, 0
      %v505 = vsel %vm494, %v481, 0
      %v508 = vsel %vm494, %v482, 0
      %v511 = vsel %vm494, %v483, 0
      %v514 = vsel %vm494, %v484, 0
      %v517 = vsel %vm494, %v485, 0
      %v520 = vsel %vm494, %v486, 0
      %v523 = vsel %vm494, %v487, 0
      %v526 = vsel %vm494, %v488, 0
      %v529 = vsel %vm494, %v489, 0
      %v532 = vsel %vm494, %v490, 0
      %v535 = vsel %vm494, %v491, 0
      %v538 = vsel %vm494, %v492, 0
      %v541 = vsel %vm494, %v493, 0
      %vm543 = vcmask 1040384
      %vm544 = vcmask 1041408
      %v545 = vsel %vm543, 4294967295, 65535
      %v546 = vsel %vm544, %v545, 0
      %v548 = vand.u32 %v412, %v546
      %v551 = vand.u32 %v413, %v546
      %553 = vmatprep.subr.bf16.mxu0 %v551
      %554 = vmatpush1.bf16.msra.mxu0 %v548
      %555 = vmatprep.subr.bf16.mxu0 0
      %556 = vmatpush1.bf16.msra.mxu0 0
      %557 = vmatprep.subr.bf16.mxu0 0
      %558 = vmatpush1.bf16.msra.mxu0 0
      %559 = vmatprep.subr.bf16.mxu0 0
      %560 = vmatpush1.bf16.msra.mxu0 0
      %561 = vmatprep.subr.bf16.mxu0 0
      %562 = vmatpush1.bf16.msra.mxu0 0
      %563 = vmatprep.subr.bf16.mxu0 0
      %564 = vmatpush1.bf16.msra.mxu0 0
      %565 = vmatprep.subr.bf16.mxu0 0
      %566 = vmatpush1.bf16.msra.mxu0 0
      %567 = vmatprep.subr.bf16.mxu0 0
      %568 = vmatpush1.bf16.msra.mxu0 0
      %569 = vmatprep.subr.bf16.mxu0 0
      %570 = vmatpush1.bf16.msra.mxu0 0
      %571 = vmatprep.subr.bf16.mxu0 0
      %572 = vmatpush1.bf16.msra.mxu0 0
      %573 = vmatprep.subr.bf16.mxu0 0
      %574 = vmatpush1.bf16.msra.mxu0 0
      %575 = vmatprep.subr.bf16.mxu0 0
      %576 = vmatpush1.bf16.msra.mxu0 0
      %577 = vmatprep.subr.bf16.mxu0 0
      %578 = vmatpush1.bf16.msra.mxu0 0
      %579 = vmatprep.subr.bf16.mxu0 0
      %580 = vmatpush1.bf16.msra.mxu0 0
      %581 = vmatprep.subr.bf16.mxu0 0
      %582 = vmatpush1.bf16.msra.mxu0 0
      %583 = vmatprep.subr.bf16.mxu0 0
      %584 = vmatpush1.bf16.msra.mxu0 0
      %585 = vmatprep.mubr.bf16.mxu0 0
      %586 = vmatmul.mubr.bf16.gmra.mrb[0].mxu0 %v496
      %v587 = vpop.f32.mrb[0].mxu0
      %v588 = vadd.f32 0.0, %v587
      %v589 = vpop.f32.mrb[0].mxu0
      %v590 = vadd.f32 0.0, %v589
      %v591 = vpop.f32.mrb[0].mxu0
      %v592 = vadd.f32 0.0, %v591
      %v593 = vpop.f32.mrb[0].mxu0
      %v594 = vadd.f32 0.0, %v593
      %595 = vmatprep.mubr.bf16.mxu0 0
      %596 = vmatmul.mubr.bf16.gmra.mrb[0].mxu0 %v499
      %v597 = vpop.f32.mrb[0].mxu0
      %v598 = vadd.f32 0.0, %v597
      %v599 = vpop.f32.mrb[0].mxu0
      %v600 = vadd.f32 0.0, %v599
      %v601 = vpop.f32.mrb[0].mxu0
      %v602 = vadd.f32 0.0, %v601
      %v603 = vpop.f32.mrb[0].mxu0
      %v604 = vadd.f32 0.0, %v603
      %605 = vmatprep.mubr.bf16.mxu0 0
      %606 = vmatmul.mubr.bf16.gmra.mrb[0].mxu0 %v502
      %v607 = vpop.f32.mrb[0].mxu0
      %v608 = vadd.f32 0.0, %v607
      %v609 = vpop.f32.mrb[0].mxu0
      %v610 = vadd.f32 0.0, %v609
      %v611 = vpop.f32.mrb[0].mxu0
      %v612 = vadd.f32 0.0, %v611
      %v613 = vpop.f32.mrb[0].mxu0
      %v614 = vadd.f32 0.0, %v613
      %615 = vmatprep.mubr.bf16.mxu0 0
      %616 = vmatmul.mubr.bf16.gmra.mrb[0].mxu0 %v505
      %v617 = vpop.f32.mrb[0].mxu0
      %v618 = vadd.f32 0.0, %v617
      %v619 = vpop.f32.mrb[0].mxu0
      %v620 = vadd.f32 0.0, %v619
      %v621 = vpop.f32.mrb[0].mxu0
      %v622 = vadd.f32 0.0, %v621
      %v623 = vpop.f32.mrb[0].mxu0
      %v624 = vadd.f32 0.0, %v623
      %625 = vmatprep.mubr.bf16.mxu0 0
      %626 = vmatmul.mubr.bf16.gmra.mrb[0].mxu0 %v508
      %v627 = vpop.f32.mrb[0].mxu0
      %v628 = vadd.f32 0.0, %v627
      %v629 = vpop.f32.mrb[0].mxu0
      %v630 = vadd.f32 0.0, %v629
      %v631 = vpop.f32.mrb[0].mxu0
      %v632 = vadd.f32 0.0, %v631
      %v633 = vpop.f32.mrb[0].mxu0
      %v634 = vadd.f32 0.0, %v633
      %635 = vmatprep.mubr.bf16.mxu0 0
      %636 = vmatmul.mubr.bf16.gmra.mrb[0].mxu0 %v511
      %v637 = vpop.f32.mrb[0].mxu0
      %v638 = vadd.f32 0.0, %v637
      %v639 = vpop.f32.mrb[0].mxu0
      %v640 = vadd.f32 0.0, %v639
      %v641 = vpop.f32.mrb[0].mxu0
      %v642 = vadd.f32 0.0, %v641
      %v643 = vpop.f32.mrb[0].mxu0
      %v644 = vadd.f32 0.0, %v643
      %645 = vmatprep.mubr.bf16.mxu0 0
      %646 = vmatmul.mubr.bf16.gmra.mrb[0].mxu0 %v514
      %v647 = vpop.f32.mrb[0].mxu0
      %v648 = vadd.f32 0.0, %v647
      %v649 = vpop.f32.mrb[0].mxu0
      %v650 = vadd.f32 0.0, %v649
      %v651 = vpop.f32.mrb[0].mxu0
      %v652 = vadd.f32 0.0, %v651
      %v653 = vpop.f32.mrb[0].mxu0
      %v654 = vadd.f32 0.0, %v653
      %655 = vmatprep.mubr.bf16.mxu0 0
      %656 = vmatmul.mubr.bf16.gmra.mrb[0].mxu0 %v517
      %v657 = vpop.f32.mrb[0].mxu0
      %v658 = vadd.f32 0.0, %v657
      %v659 = vpop.f32.mrb[0].mxu0
      %v660 = vadd.f32 0.0, %v659
      %v661 = vpop.f32.mrb[0].mxu0
      %v662 = vadd.f32 0.0, %v661
      %v663 = vpop.f32.mrb[0].mxu0
      %v664 = vadd.f32 0.0, %v663
      %665 = vmatprep.mubr.bf16.mxu0 0
      %666 = vmatmul.mubr.bf16.gmra.mrb[0].mxu0 %v520
      %v667 = vpop.f32.mrb[0].mxu0
      %v668 = vadd.f32 0.0, %v667
      %v669 = vpop.f32.mrb[0].mxu0
      %v670 = vadd.f32 0.0, %v669
      %v671 = vpop.f32.mrb[0].mxu0
      %v672 = vadd.f32 0.0, %v671
      %v673 = vpop.f32.mrb[0].mxu0
      %v674 = vadd.f32 0.0, %v673
      %675 = vmatprep.mubr.bf16.mxu0 0
      %676 = vmatmul.mubr.bf16.gmra.mrb[0].mxu0 %v523
      %v677 = vpop.f32.mrb[0].mxu0
      %v678 = vadd.f32 0.0, %v677
      %v679 = vpop.f32.mrb[0].mxu0
      %v680 = vadd.f32 0.0, %v679
      %v681 = vpop.f32.mrb[0].mxu0
      %v682 = vadd.f32 0.0, %v681
      %v683 = vpop.f32.mrb[0].mxu0
      %v684 = vadd.f32 0.0, %v683
      %685 = vmatprep.mubr.bf16.mxu0 0
      %686 = vmatmul.mubr.bf16.gmra.mrb[0].mxu0 %v526
      %v687 = vpop.f32.mrb[0].mxu0
      %v688 = vadd.f32 0.0, %v687
      %v689 = vpop.f32.mrb[0].mxu0
      %v690 = vadd.f32 0.0, %v689
      %v691 = vpop.f32.mrb[0].mxu0
      %v692 = vadd.f32 0.0, %v691
      %v693 = vpop.f32.mrb[0].mxu0
      %v694 = vadd.f32 0.0, %v693
      %695 = vmatprep.mubr.bf16.mxu0 0
      %696 = vmatmul.mubr.bf16.gmra.mrb[0].mxu0 %v529
      %v697 = vpop.f32.mrb[0].mxu0
      %v698 = vadd.f32 0.0, %v697
      %v699 = vpop.f32.mrb[0].mxu0
      %v700 = vadd.f32 0.0, %v699
      %v701 = vpop.f32.mrb[0].mxu0
      %v702 = vadd.f32 0.0, %v701
      %v703 = vpop.f32.mrb[0].mxu0
      %v704 = vadd.f32 0.0, %v703
      %705 = vmatprep.mubr.bf16.mxu0 0
      %706 = vmatmul.mubr.bf16.gmra.mrb[0].mxu0 %v532
      %v707 = vpop.f32.mrb[0].mxu0
      %v708 = vadd.f32 0.0, %v707
      %v709 = vpop.f32.mrb[0].mxu0
      %v710 = vadd.f32 0.0, %v709
      %v711 = vpop.f32.mrb[0].mxu0
      %v712 = vadd.f32 0.0, %v711
      %v713 = vpop.f32.mrb[0].mxu0
      %v714 = vadd.f32 0.0, %v713
      %715 = vmatprep.mubr.bf16.mxu0 0
      %716 = vmatmul.mubr.bf16.gmra.mrb[0].mxu0 %v535
      %v717 = vpop.f32.mrb[0].mxu0
      %v718 = vadd.f32 0.0, %v717
      %v719 = vpop.f32.mrb[0].mxu0
      %v720 = vadd.f32 0.0, %v719
      %v721 = vpop.f32.mrb[0].mxu0
      %v722 = vadd.f32 0.0, %v721
      %v723 = vpop.f32.mrb[0].mxu0
      %v724 = vadd.f32 0.0, %v723
      %725 = vmatprep.mubr.bf16.mxu0 0
      %726 = vmatmul.mubr.bf16.gmra.mrb[0].mxu0 %v538
      %v727 = vpop.f32.mrb[0].mxu0
      %v728 = vadd.f32 0.0, %v727
      %v729 = vpop.f32.mrb[0].mxu0
      %v730 = vadd.f32 0.0, %v729
      %v731 = vpop.f32.mrb[0].mxu0
      %v732 = vadd.f32 0.0, %v731
      %v733 = vpop.f32.mrb[0].mxu0
      %v734 = vadd.f32 0.0, %v733
      %735 = vmatprep.mubr.bf16.mxu0 0
      %736 = vmatmul.mubr.bf16.gmra.mrb[0].mxu0 %v541
      %v737 = vpop.f32.mrb[0].mxu0
      %v738 = vadd.f32 0.0, %v737
      %v739 = vpop.f32.mrb[0].mxu0
      %v740 = vadd.f32 0.0, %v739
      %v741 = vpop.f32.mrb[0].mxu0
      %v742 = vadd.f32 0.0, %v741
      %v743 = vpop.f32.mrb[0].mxu0
      %v744 = vadd.f32 0.0, %v743
      %745 = vdwg.mxu0
      %v746 = vmax.f32 %v588, 0.0
      %v747 = vmax.f32 %v590, 0.0
      %v748 = vmax.f32 %v592, 0.0
      %v749 = vmax.f32 %v594, 0.0
      %v750 = vmax.f32 %v598, 0.0
      %v751 = vmax.f32 %v600, 0.0
      %v752 = vmax.f32 %v602, 0.0
      %v753 = vmax.f32 %v604, 0.0
      %v754 = vmax.f32 %v608, 0.0
      %v755 = vmax.f32 %v610, 0.0
      %v756 = vmax.f32 %v612, 0.0
      %v757 = vmax.f32 %v614, 0.0
      %v758 = vmax.f32 %v618, 0.0
      %v759 = vmax.f32 %v620, 0.0
      %v760 = vmax.f32 %v622, 0.0
      %v761 = vmax.f32 %v624, 0.0
      %v762 = vmax.f32 %v628, 0.0
      %v763 = vmax.f32 %v630, 0.0
      %v764 = vmax.f32 %v632, 0.0
      %v765 = vmax.f32 %v634, 0.0
      %v766 = vmax.f32 %v638, 0.0
      %v767 = vmax.f32 %v640, 0.0
      %v768 = vmax.f32 %v642, 0.0
      %v769 = vmax.f32 %v644, 0.0
      %v770 = vmax.f32 %v648, 0.0
      %v771 = vmax.f32 %v650, 0.0
      %v772 = vmax.f32 %v652, 0.0
      %v773 = vmax.f32 %v654, 0.0
      %v774 = vmax.f32 %v658, 0.0
      %v775 = vmax.f32 %v660, 0.0
      %v776 = vmax.f32 %v662, 0.0
      %v777 = vmax.f32 %v664, 0.0
      %v778 = vmax.f32 %v668, 0.0
      %v779 = vmax.f32 %v670, 0.0
      %v780 = vmax.f32 %v672, 0.0
      %v781 = vmax.f32 %v674, 0.0
      %v782 = vmax.f32 %v678, 0.0
      %v783 = vmax.f32 %v680, 0.0
      %v784 = vmax.f32 %v682, 0.0
      %v785 = vmax.f32 %v684, 0.0
      %v786 = vmax.f32 %v688, 0.0
      %v787 = vmax.f32 %v690, 0.0
      %v788 = vmax.f32 %v692, 0.0
      %v789 = vmax.f32 %v694, 0.0
      %v790 = vmax.f32 %v698, 0.0
      %v791 = vmax.f32 %v700, 0.0
      %v792 = vmax.f32 %v702, 0.0
      %v793 = vmax.f32 %v704, 0.0
      %v794 = vmax.f32 %v708, 0.0
      %v795 = vmax.f32 %v710, 0.0
      %v796 = vmax.f32 %v712, 0.0
      %v797 = vmax.f32 %v714, 0.0
      %v798 = vmax.f32 %v718, 0.0
      %v799 = vmax.f32 %v720, 0.0
      %v800 = vmax.f32 %v722, 0.0
      %v801 = vmax.f32 %v724, 0.0
      %v802 = vmax.f32 %v728, 0.0
      %v803 = vmax.f32 %v730, 0.0
      %v804 = vmax.f32 %v732, 0.0
      %v805 = vmax.f32 %v734, 0.0
      %v806 = vmax.f32 %v738, 0.0
      %v807 = vmax.f32 %v740, 0.0
      %v808 = vmax.f32 %v742, 0.0
      %v809 = vmax.f32 %v744, 0.0
      %v810 = vmin.f32 %v746, 1.0
      %v811 = vmin.f32 %v747, 1.0
      %v812 = vmin.f32 %v748, 1.0
      %v813 = vmin.f32 %v749, 1.0
      %v814 = vmin.f32 %v750, 1.0
      %v815 = vmin.f32 %v751, 1.0
      %v816 = vmin.f32 %v752, 1.0
      %v817 = vmin.f32 %v753, 1.0
      %v818 = vmin.f32 %v754, 1.0
      %v819 = vmin.f32 %v755, 1.0
      %v820 = vmin.f32 %v756, 1.0
      %v821 = vmin.f32 %v757, 1.0
      %v822 = vmin.f32 %v758, 1.0
      %v823 = vmin.f32 %v759, 1.0
      %v824 = vmin.f32 %v760, 1.0
      %v825 = vmin.f32 %v761, 1.0
      %v826 = vmin.f32 %v762, 1.0
      %v827 = vmin.f32 %v763, 1.0
      %v828 = vmin.f32 %v764, 1.0
      %v829 = vmin.f32 %v765, 1.0
      %v830 = vmin.f32 %v766, 1.0
      %v831 = vmin.f32 %v767, 1.0
      %v832 = vmin.f32 %v768, 1.0
      %v833 = vmin.f32 %v769, 1.0
      %v834 = vmin.f32 %v770, 1.0
      %v835 = vmin.f32 %v771, 1.0
      %v836 = vmin.f32 %v772, 1.0
      %v837 = vmin.f32 %v773, 1.0
      %v838 = vmin.f32 %v774, 1.0
      %v839 = vmin.f32 %v775, 1.0
      %v840 = vmin.f32 %v776, 1.0
      %v841 = vmin.f32 %v777, 1.0
      %v842 = vmin.f32 %v778, 1.0
      %v843 = vmin.f32 %v779, 1.0
      %v844 = vmin.f32 %v780, 1.0
      %v845 = vmin.f32 %v781, 1.0
      %v846 = vmin.f32 %v782, 1.0
      %v847 = vmin.f32 %v783, 1.0
      %v848 = vmin.f32 %v784, 1.0
      %v849 = vmin.f32 %v785, 1.0
      %v850 = vmin.f32 %v786, 1.0
      %v851 = vmin.f32 %v787, 1.0
      %v852 = vmin.f32 %v788, 1.0
      %v853 = vmin.f32 %v789, 1.0
      %v854 = vmin.f32 %v790, 1.0
      %v855 = vmin.f32 %v791, 1.0
      %v856 = vmin.f32 %v792, 1.0
      %v857 = vmin.f32 %v793, 1.0
      %v858 = vmin.f32 %v794, 1.0
      %v859 = vmin.f32 %v795, 1.0
      %v860 = vmin.f32 %v796, 1.0
      %v861 = vmin.f32 %v797, 1.0
      %v862 = vmin.f32 %v798, 1.0
      %v863 = vmin.f32 %v799, 1.0
      %v864 = vmin.f32 %v800, 1.0
      %v865 = vmin.f32 %v801, 1.0
      %v866 = vmin.f32 %v802, 1.0
      %v867 = vmin.f32 %v803, 1.0
      %v868 = vmin.f32 %v804, 1.0
      %v869 = vmin.f32 %v805, 1.0
      %v870 = vmin.f32 %v806, 1.0
      %v871 = vmin.f32 %v807, 1.0
      %v872 = vmin.f32 %v808, 1.0
      %v873 = vmin.f32 %v809, 1.0
      %v874 = vld [vmem:[%s313] sm:$0xf]
      %v875 = vpack.c.bf16 %v812, %v810
      %v876 = vpack.c.bf16 %v813, %v811
      %v877 = vpack.c.bf16 %v816, %v814
      %v878 = vpack.c.bf16 %v817, %v815
      %v879 = vpack.c.bf16 %v820, %v818
      %v880 = vpack.c.bf16 %v821, %v819
      %v881 = vpack.c.bf16 %v824, %v822
      %v882 = vpack.c.bf16 %v825, %v823
      %v883 = vpack.c.bf16 %v828, %v826
      %v884 = vpack.c.bf16 %v829, %v827
      %v885 = vpack.c.bf16 %v832, %v830
      %v886 = vpack.c.bf16 %v833, %v831
      %v887 = vpack.c.bf16 %v836, %v834
      %v888 = vpack.c.bf16 %v837, %v835
      %v889 = vpack.c.bf16 %v840, %v838
      %v890 = vpack.c.bf16 %v841, %v839
      %v891 = vpack.c.bf16 %v844, %v842
      %v892 = vpack.c.bf16 %v845, %v843
      %v893 = vpack.c.bf16 %v848, %v846
      %v894 = vpack.c.bf16 %v849, %v847
      %v895 = vpack.c.bf16 %v852, %v850
      %v896 = vpack.c.bf16 %v853, %v851
      %v897 = vpack.c.bf16 %v856, %v854
      %v898 = vpack.c.bf16 %v857, %v855
      %v899 = vpack.c.bf16 %v860, %v858
      %v900 = vpack.c.bf16 %v861, %v859
      %v901 = vpack.c.bf16 %v864, %v862
      %v902 = vpack.c.bf16 %v865, %v863
      %v903 = vpack.c.bf16 %v868, %v866
      %v904 = vpack.c.bf16 %v869, %v867
      %v905 = vpack.c.bf16 %v872, %v870
      %v906 = vpack.c.bf16 %v873, %v871
      %v909 = vunpack.c.l.s4 1983009808
      %v910 = vunpack.c.0.s8 %v909
      %v911 = vlaneseq
      %v912 = vshrl.u32 %v911, 7
      %v913 = vsub.s32 %v910, %v912
      %v914 = vrot.slane %v874, %v913
      %v915 = vcombine.high %v914, %v914
      %918 = vmatprep.subr.bf16.mxu0 %v876
      %919 = vmatpush1.bf16.msra.mxu0 %v875
      %920 = vmatprep.subr.bf16.mxu0 %v878
      %921 = vmatpush1.bf16.msra.mxu0 %v877
      %922 = vmatprep.subr.bf16.mxu0 %v880
      %923 = vmatpush1.bf16.msra.mxu0 %v879
      %924 = vmatprep.subr.bf16.mxu0 %v882
      %925 = vmatpush1.bf16.msra.mxu0 %v881
      %926 = vmatprep.subr.bf16.mxu0 %v884
      %927 = vmatpush1.bf16.msra.mxu0 %v883
      %928 = vmatprep.subr.bf16.mxu0 %v886
      %929 = vmatpush1.bf16.msra.mxu0 %v885
      %930 = vmatprep.subr.bf16.mxu0 %v888
      %931 = vmatpush1.bf16.msra.mxu0 %v887
      %932 = vmatprep.subr.bf16.mxu0 %v890
      %933 = vmatpush1.bf16.msra.mxu0 %v889
      %934 = vmatprep.subr.bf16.mxu0 %v892
      %935 = vmatpush1.bf16.msra.mxu0 %v891
      %936 = vmatprep.subr.bf16.mxu0 %v894
      %937 = vmatpush1.bf16.msra.mxu0 %v893
      %938 = vmatprep.subr.bf16.mxu0 %v896
      %939 = vmatpush1.bf16.msra.mxu0 %v895
      %940 = vmatprep.subr.bf16.mxu0 %v898
      %941 = vmatpush1.bf16.msra.mxu0 %v897
      %942 = vmatprep.subr.bf16.mxu0 %v900
      %943 = vmatpush1.bf16.msra.mxu0 %v899
      %944 = vmatprep.subr.bf16.mxu0 %v902
      %945 = vmatpush1.bf16.msra.mxu0 %v901
      %946 = vmatprep.subr.bf16.mxu0 %v904
      %947 = vmatpush1.bf16.msra.mxu0 %v903
      %948 = vmatprep.subr.bf16.mxu0 %v906
      %949 = vmatpush1.bf16.msra.mxu0 %v905
      %950 = vmatprep.mubr.bf16.mxu0 %v915
      %951 = vmatmul.mubr.bf16.gmra.mrb[0].mxu0 %v914
      %v952 = vpop.f32.mrb[0].mxu0
      %v953 = vadd.f32 0.0, %v952
      %v954 = vpop.f32.mrb[0].mxu0
      %v955 = vadd.f32 0.0, %v954
      %v956 = vpop.f32.mrb[0].mxu0
      %v957 = vpop.f32.mrb[0].mxu0
      %958 = vdwg.mxu0
      %v959 = vld [vmem:[%s322] sm:$0xf]
      %v960 = vunpack.c.l.bf16 %v959
      %v962 = vcombine.high %v960, %v960
      %v964 = vmul.f32 %v953, %v960
      %v965 = vmul.f32 %v955, %v962
      %vm966 = vcmp.le.f32.partialorder %v964, 0.0031308
      %vm967 = vcmp.le.f32.partialorder %v965, 0.0031308
      %v968 = vmul.f32 %v964, 12.92
      %v969 = vmul.f32 %v965, 12.92
      %v970 = vmax.f32 %v964, 0.0031308
      %v971 = vmax.f32 %v965, 0.0031308
      %v972 = vpow.f32 %v970, 0.41666666
      %v973 = vpow.f32 %v971, 0.41666666
      %v974 = vmul.f32 %v972, 1.055
      %v975 = vmul.f32 %v973, 1.055
      %v976 = vsub.f32 %v974, 0.055
      %v977 = vsub.f32 %v975, 0.055
      %v978 = vsel %vm966, %v968, %v976
      %v979 = vsel %vm967, %v969, %v977
      %v982 = vcombine.low %v978, %v979
      %984 = vst [vmem:[%s332] sm:$0x77] %v982
      %s985 = smul.u32 2, %s21
      %p986 = scmp.lt.s32.totalorder %s22, 1
      %s987 = scalar_select %p986, %s22, 1
      %p988 = scmp.lt.s32.totalorder %s985, 1
      %s989 = scalar_select %p988, %s985, 1
      %s990 = smul.addr %s987, 2
      %s991 = sadd.s32 %s989, %s990
      %s992 = smul.addr %s991, 4
      %s993 = scalar_lea.vmem %s4, %s992
      %s994 = smul.u32 2, %s21
      %p995 = scmp.lt.s32.totalorder %s994, 1
      %s996 = scalar_select %p995, %s994, 1
      %s997 = smul.addr %s996, 4
      %s998 = scalar_lea.vmem %s5, %s997
      // Predicated region
      $region41: #{tpu_custom_call.1} parent=35 // pred_check
        %p999 = pneg %p155
      $region42: #{tpu_custom_call.1} parent=35 // pred_check_branch
        %1001 = sbr.rel (%p999) target = $region44
      $region43: #{tpu_custom_call.1} parent=35 // pred_region
        %s1002 = smul.u32 2, %s21
      $region44: #{tpu_custom_call.1} parent=35 // pred_fallthru
        _
      // Predicated region
      $region45: #{tpu_custom_call.1} parent=35 // pred_check
        %p1003 = pneg %p181
      $region46: #{tpu_custom_call.1} parent=35 // pred_check_branch
        %1005 = sbr.rel (%p1003) target = $region48
      $region47: #{tpu_custom_call.1} parent=35 // pred_region
        %s1006 = smul.u32 2, %s21
      $region48: #{tpu_custom_call.1} parent=35 // pred_fallthru
        _
      // Predicated region
      $region49: #{tpu_custom_call.1} parent=35 // pred_check
        %p1007 = pneg %p181
      $region50: #{tpu_custom_call.1} parent=35 // pred_check_branch
        %1009 = sbr.rel (%p1007) target = $region52
      $region51: #{tpu_custom_call.1} parent=35 // pred_region
        %s1010 = smul.u32 2, %s21
        %p1011 = scmp.lt.s32.totalorder %s1010, 1
        %s1012 = scalar_select %p1011, %s1010, 1
        %s1013 = smul.addr %s1012, 4
        %s1014 = scalar_lea.vmem %s5, %s1013
      $region52: #{tpu_custom_call.1} parent=35 // pred_fallthru
        _
    $region36: #{tpu_custom_call.1} parent=5 // pred_fallthru
      _
    %p1015 = scmp.le.s32.totalorder 2, %s12
    // Predicated region
    $region53: #{tpu_custom_call.1} parent=5 // pred_check
      %p1016 = pneg %p1015
    $region54: #{tpu_custom_call.1} parent=5 // pred_check_branch
      %1018 = sbr.rel (%p1016) target = $region56
    $region55: #{tpu_custom_call.1} parent=5 // pred_region
      %s1019 = ssub.s32 %s12, 2
      // Predicated region
      $region57: #{tpu_custom_call.1} parent=55 // pred_check
        %p1020 = pneg %p161
      $region58: #{tpu_custom_call.1} parent=55 // pred_check_branch
        %1022 = sbr.rel (%p1020) target = $region60
      $region59: #{tpu_custom_call.1} parent=55 // pred_region
        %s1023 = smul.u32 2, %s23
        %p1024 = scmp.lt.s32.totalorder %s24, 1
        %s1025 = scalar_select %p1024, %s24, 1
        %p1026 = scmp.lt.s32.totalorder %s1023, 1
        %s1027 = scalar_select %p1026, %s1023, 1
        %s1028 = smul.addr %s1025, 2
        %s1029 = sadd.s32 %s1027, %s1028
        %s1030 = smul.addr %s1029, 4
        %s1031 = scalar_lea.vmem %s4, %s1030
      $region60: #{tpu_custom_call.1} parent=55 // pred_fallthru
        _
    $region56: #{tpu_custom_call.1} parent=5 // pred_fallthru
      _
  $region6: #{tpu_custom_call.1} parent=0 // loop_footer
    %s16 = sadd.s32 1, %s12
  $region7: #{tpu_custom_call.1} parent=0 // loop_footer_branch
    %11 = sbr.rel target = $region3
  $region8: #{tpu_custom_call.1} parent=0 // loop_exit
    _

</llo_original>
